<compile_context>
chip_gen: v6e
topology: v6e:2x2x1
jax: 0.10.0
libtpu: 0.0.40
codegen_flags: <defaults>
</compile_context>

<pallas_src>
import jax
import jax.numpy as jnp
from jax.experimental import pallas as pl
from jax.experimental.pallas import tpu as pltpu


D_IN = 768         # BERT hidden size
H = 128            # interaction layer width (already lane-dense)
D_OUT = 2          # number of classes
D_OUT_PAD = 8      # classes padded to one sublane group for the (8, B) output


def _round_up(x, m):
    return (x + m - 1) // m * m


# ------------------------- Pallas kernel (hot path) -------------------------

def _head_kernel(x_ref, w1_ref, b1_ref, w2_ref, b2_ref, o_ref):
    """Fused pruned head for one batch tile.

    x:  (tb, 768) f32/bf16   w1: (768, 128) bf16   b1: (1, 128) f32
    w2: (8, 128)  bf16       b2: (8, 1)     f32    o:  (8, tb)  f32
    o[c, r] = sum_k relu(x[r] @ w1 + b1)[k] * w2[c, k] + b2[c]
    """
    x = x_ref[...].astype(jnp.bfloat16)                                # in-kernel cast (VPU)
    h = jnp.dot(x, w1_ref[...], preferred_element_type=jnp.float32)    # (tb, 128) f32
    h = jnp.maximum(h + b1_ref[...], 0.0)                              # bias + ReLU in f32
    # Transposed classifier: contract over K=128 -> (8, tb), lane-dense along batch.
    o = jax.lax.dot_general(
        w2_ref[...], h.astype(jnp.bfloat16),
        dimension_numbers=(((1,), (1,)), ((), ())),
        preferred_element_type=jnp.float32)
    o_ref[...] = o + b2_ref[...]                                       # single unmasked store


def social_head_forward(cls_hidden, w1, b1, w2, b2, *, block_batch=1024):
    """Tiled-over-batch forward of the pruned classification head.

    cls_hidden: (B, 768), consumed in its native dtype (cast to bf16 in-kernel).
    Returns (B, 2) f32 logits.
    """
    B = cls_hidden.shape[0]

    if B < 128:
        # Single block spanning the whole (tiny) batch: full-dim blocks, no padding.
        tb = B
    else:
        # Lane-dense tile (multiple of 128), split into >= 2 grid steps when
        # possible (v7x megacore), capped at block_batch rows per tile.
        tb = min(block_batch, _round_up(pl.cdiv(B, 2), 128))
    grid_b = pl.cdiv(B, tb)
    n_out = grid_b * tb                    # padded batch extent of the (8, n_out) output

    flops = 2 * grid_b * tb * (D_IN * H + H * D_OUT_PAD)
    bytes_accessed = (cls_hidden.size * cls_hidden.dtype.itemsize
                      + w1.size * 2 + w2.size * 2 + b1.size * 4 + b2.size * 4
                      + D_OUT_PAD * n_out * 4)

    out = pl.pallas_call(
        _head_kernel,
        out_shape=jax.ShapeDtypeStruct((D_OUT_PAD, n_out), jnp.float32),
        grid_spec=pltpu.PrefetchScalarGridSpec(
            num_scalar_prefetch=0,
            grid=(grid_b,),
            in_specs=[
                pl.BlockSpec((tb, D_IN), lambda i: (i, 0)),       # x: streamed per tile
                pl.BlockSpec((D_IN, H), lambda i: (0, 0)),        # weights: VMEM-resident
                pl.BlockSpec((1, H), lambda i: (0, 0)),
                pl.BlockSpec((D_OUT_PAD, H), lambda i: (0, 0)),
                pl.BlockSpec((D_OUT_PAD, 1), lambda i: (0, 0)),
            ],
            out_specs=pl.BlockSpec((D_OUT_PAD, tb), lambda i: (0, i)),
        ),
        compiler_params=pltpu.CompilerParams(
            dimension_semantics=("parallel",)),                    # megacore on v7x
        cost_estimate=pl.CostEstimate(flops=flops, transcendentals=0,
                                      bytes_accessed=bytes_accessed),
    )(cls_hidden, w1, b1, w2, b2)

    return out[:D_OUT, :B].T                                      # (B, 2); tiny slice


# ----------------------- parameter construction (glue) ----------------------

def l1_unstructured_prune(w, amount=0.4):
    """Zero the `amount` fraction of smallest-|w| entries (per tensor),
    matching torch.nn.utils.prune.l1_unstructured + prune.remove."""
    flat = jnp.abs(w).reshape(-1)
    n = flat.shape[0]
    k = int(round(amount * n))
    if k == 0:
        return w
    order = jnp.argsort(flat)                    # ascending |w|
    mask = jnp.ones((n,), w.dtype).at[order[:k]].set(0.0)
    return w * mask.reshape(w.shape)


def init_linear(key, in_f, out_f):
    """nn.Linear-style init (uniform +-1/sqrt(fan_in)); weight as (in_f, out_f),
    bias as a (1, out_f) row."""
    kw, kb = jax.random.split(key)
    bound = 1.0 / jnp.sqrt(jnp.float32(in_f))
    w = jax.random.uniform(kw, (in_f, out_f), jnp.float32, -bound, bound)
    b = jax.random.uniform(kb, (1, out_f), jnp.float32, -bound, bound)
    return w, b


class SocialInteractionHeadPallas:
    """JAX/Pallas port of SocialInteractionModel's pruned classification head."""

    def __init__(self, key, prune_amount=0.4):
        k1, k2 = jax.random.split(key)
        w1, b1 = init_linear(k1, D_IN, H)        # (768, 128), (1, 128)
        w2, b2 = init_linear(k2, H, D_OUT)       # (128, 2),   (1, 2)
        # PruningMixin.apply_pruning(): l1_unstructured(amount=0.4) per nn.Linear
        w1 = l1_unstructured_prune(w1, prune_amount)
        w2 = l1_unstructured_prune(w2, prune_amount)
        # Classifier stored transposed (classes on sublanes) and padded to 8 rows;
        # extra rows are exact zeros and are sliced away after the kernel.
        w2t = jnp.zeros((D_OUT_PAD, H), jnp.float32).at[:D_OUT, :].set(w2.T)
        b2p = jnp.zeros((D_OUT_PAD, 1), jnp.float32).at[:D_OUT, 0].set(b2[0])
        self.w1 = w1.astype(jnp.bfloat16)
        self.b1 = b1                              # f32, added to the f32 accumulator
        self.w2 = w2t.astype(jnp.bfloat16)
        self.b2 = b2p

    def __call__(self, cls_hidden):
        return social_head_forward(cls_hidden, self.w1, self.b1, self.w2, self.b2)


# ---------------------------------- main ------------------------------------

if __name__ == "__main__":
    key = jax.random.PRNGKey(0)
    k_model, k_x = jax.random.split(key)

    model = SocialInteractionHeadPallas(k_model)

    B = 8
    # TODO(synk): stand-in for BertModel(...).last_hidden_state[:, 0, :] (CLS).
    cls_hidden = jax.random.normal(k_x, (B, D_IN), dtype=jnp.float32)

    logits = model(cls_hidden)
    jax.block_until_ready(logits)

    # bf16-consistent plain-JAX reference of the same pruned head.
    xb = cls_hidden.astype(jnp.bfloat16)
    h_ref = jnp.maximum(
        jnp.dot(xb, model.w1, preferred_element_type=jnp.float32) + model.b1, 0.0)
    ref_t = jax.lax.dot_general(
        model.w2, h_ref.astype(jnp.bfloat16),
        dimension_numbers=(((1,), (1,)), ((), ())),
        preferred_element_type=jnp.float32) + model.b2
    ref = ref_t[:D_OUT, :].T

    assert logits.shape == (B, D_OUT)
    assert jnp.allclose(logits, ref, atol=2e-2, rtol=2e-2)

    print("KERNEL_OK")
</pallas_src>

<mosaic_0001>
module attributes {stable_mosaic.version = 11 : i64} {
  func.func @_head_kernel(%arg0: i32, %arg1: memref<8x768xf32, #tpu.memory_space<vmem>>, %arg2: memref<768x128xbf16, #tpu.memory_space<vmem>>, %arg3: memref<1x128xf32, #tpu.memory_space<vmem>>, %arg4: memref<8x128xbf16, #tpu.memory_space<vmem>>, %arg5: memref<8x1xf32, #tpu.memory_space<vmem>>, %arg6: memref<8x8xf32, #tpu.memory_space<vmem>>) attributes {dimension_semantics = [#tpu.dimension_semantics<parallel>], iteration_bounds = array<i64: 1>, scalar_prefetch = 0 : i64, scratch_operands = 0 : i64, tpu.core_type = #tpu.core_type<tc>, window_params = [{transform_indices = @transform_0, window_bounds = array<i64: 8, 768>}, {pipeline_mode = #tpu.pipeline_mode<synchronous>, transform_indices = @transform_1, window_bounds = array<i64: 768, 128>}, {pipeline_mode = #tpu.pipeline_mode<synchronous>, transform_indices = @transform_2, window_bounds = array<i64: 1, 128>}, {pipeline_mode = #tpu.pipeline_mode<synchronous>, transform_indices = @transform_3, window_bounds = array<i64: 8, 128>}, {pipeline_mode = #tpu.pipeline_mode<synchronous>, transform_indices = @transform_4, window_bounds = array<i64: 8, 1>}, {transform_indices = @transform_5, window_bounds = array<i64: 8, 8>}]} {
    %c0 = arith.constant 0 : index
    %c0_0 = arith.constant 0 : index
    %0 = vector.load %arg1[%c0, %c0_0] : memref<8x768xf32, #tpu.memory_space<vmem>>, vector<8x768xf32>
    %1 = arith.truncf %0 : vector<8x768xf32> to vector<8x768xbf16>
    %c0_1 = arith.constant 0 : index
    %c0_2 = arith.constant 0 : index
    %2 = vector.load %arg2[%c0_1, %c0_2] : memref<768x128xbf16, #tpu.memory_space<vmem>>, vector<768x128xbf16>
    %cst = arith.constant dense<0.000000e+00> : vector<8x128xf32>
    %3 = tpu.matmul %1, %2, %cst {dimension_numbers = #tpu.dot_dimension_numbers<[1], [0], [0], [1], [0, 0, 1, 1], [], []>} : vector<8x768xbf16>, vector<768x128xbf16>, vector<8x128xf32> -> vector<8x128xf32>
    %c0_3 = arith.constant 0 : index
    %c0_4 = arith.constant 0 : index
    %4 = vector.load %arg3[%c0_3, %c0_4] : memref<1x128xf32, #tpu.memory_space<vmem>>, vector<1x128xf32>
    %5 = vector.broadcast %4 : vector<1x128xf32> to vector<8x128xf32>
    %6 = arith.addf %3, %5 : vector<8x128xf32>
    %cst_5 = arith.constant 0.000000e+00 : f32
    %7 = vector.broadcast %cst_5 : f32 to vector<8x128xf32>
    %8 = arith.maximumf %6, %7 : vector<8x128xf32>
    %c0_6 = arith.constant 0 : index
    %c0_7 = arith.constant 0 : index
    %9 = vector.load %arg4[%c0_6, %c0_7] : memref<8x128xbf16, #tpu.memory_space<vmem>>, vector<8x128xbf16>
    %10 = arith.truncf %8 : vector<8x128xf32> to vector<8x128xbf16>
    %cst_8 = arith.constant dense<0.000000e+00> : vector<8x8xf32>
    %11 = tpu.matmul %9, %10, %cst_8 {dimension_numbers = #tpu.dot_dimension_numbers<[1], [1], [0], [0], [0, 0, 1, 0], [], []>} : vector<8x128xbf16>, vector<8x128xbf16>, vector<8x8xf32> -> vector<8x8xf32>
    %c0_9 = arith.constant 0 : index
    %c0_10 = arith.constant 0 : index
    %12 = vector.load %arg5[%c0_9, %c0_10] : memref<8x1xf32, #tpu.memory_space<vmem>>, vector<8x1xf32>
    %13 = vector.broadcast %12 : vector<8x1xf32> to vector<8x8xf32>
    %14 = arith.addf %11, %13 : vector<8x8xf32>
    %c0_11 = arith.constant 0 : index
    %c0_12 = arith.constant 0 : index
    %15 = vector.load %arg6[%c0_11, %c0_12] : memref<8x8xf32, #tpu.memory_space<vmem>>, vector<8x8xf32>
    tpu.vector_store %arg6[%c0_11, %c0_12], %14 {strides = array<i32>} : memref<8x8xf32, #tpu.memory_space<vmem>>, vector<8x8xf32>,
    return
  }
  func.func @transform_0(%arg0: i32) -> (i32, i32) {
    %c0_i32 = arith.constant 0 : i32
    %c0_i32_0 = arith.constant 0 : i32
    return %arg0, %c0_i32 : i32, i32
  }
  func.func @transform_1(%arg0: i32) -> (i32, i32) {
    %c0_i32 = arith.constant 0 : i32
    %c0_i32_0 = arith.constant 0 : i32
    %c0_i32_1 = arith.constant 0 : i32
    return %c0_i32, %c0_i32_0 : i32, i32
  }
  func.func @transform_2(%arg0: i32) -> (i32, i32) {
    %c0_i32 = arith.constant 0 : i32
    %c0_i32_0 = arith.constant 0 : i32
    %c0_i32_1 = arith.constant 0 : i32
    return %c0_i32, %c0_i32_0 : i32, i32
  }
  func.func @transform_3(%arg0: i32) -> (i32, i32) {
    %c0_i32 = arith.constant 0 : i32
    %c0_i32_0 = arith.constant 0 : i32
    %c0_i32_1 = arith.constant 0 : i32
    return %c0_i32, %c0_i32_0 : i32, i32
  }
  func.func @transform_4(%arg0: i32) -> (i32, i32) {
    %c0_i32 = arith.constant 0 : i32
    %c0_i32_0 = arith.constant 0 : i32
    %c0_i32_1 = arith.constant 0 : i32
    return %c0_i32, %c0_i32_0 : i32, i32
  }
  func.func @transform_5(%arg0: i32) -> (i32, i32) {
    %c0_i32 = arith.constant 0 : i32
    %c0_i32_0 = arith.constant 0 : i32
    return %c0_i32, %arg0 : i32, i32
  }
}

</mosaic_0001>

<llo_original>
// kernel: tpu_custom_call.1
$region0: #{tpu_custom_call.1}
  #allocation0 [shape = 'u32[]', space=smem, size = 0x4, offset = 0x4, fixed_abs, tag = 'smem constant byte address 0x4 - core index']
  #allocation1 [shape = 'u32[144,128]{1,0:T(1,128)}', space=vmem, size = 0x12000, scoped, tag = 'internal scratch']
  %s0 = inlined_call_operand.hbm [shape: f32[8,768], index: 0, kind: input, shape index: {}]
  %s1 = inlined_call_operand.hbm [shape: bf16[768,128], index: 1, kind: input, shape index: {}]
  %s2 = inlined_call_operand.vmem [shape: f32[1,128], index: 2, kind: input, shape index: {}]
  %s3 = inlined_call_operand.vmem [shape: bf16[8,128], index: 3, kind: input, shape index: {}]
  %s4 = inlined_call_operand.vmem [shape: f32[8,1], index: 4, kind: input, shape index: {}]
  %s5 = inlined_call_operand.hbm [shape: f32[8,8], index: 5, kind: output, shape index: {}]
  %s6 = sld [smem:[#allocation0]]
  $region38: #{tpu_custom_call.1} parent=0
    _
  %s8 = ssub.s32 1, %s6
  %s9 = scalar_select 0, %s8, %s6
  $region1: #{tpu_custom_call.1} parent=0
    #allocation2 [shape = 'u8[24576]{0}', space=vmem, size = 0x6000, scoped, tag = 'input window, operand 0, single buffered']
    #allocation3 [shape = 's32[1]{0}', space=sflag, size = 0x4, scoped, tag = 'scoped memory for tpu_custom_call.1']
    #allocation4 [shape = 's32[1]{0}', space=sflag, size = 0x4, scoped, tag = 'scoped memory for tpu_custom_call.1']
    #allocation5 [shape = 'u8[196608]{0}', space=vmem, size = 0x30000, scoped, tag = 'input window, operand 1, single buffered']
    #allocation6 [shape = 's32[1]{0}', space=sflag, size = 0x4, scoped, tag = 'scoped memory for tpu_custom_call.1']
    #allocation7 [shape = 'u8[4096]{0}', space=vmem, size = 0x1000, scoped, tag = 'output window, operand 0, single buffered']
    %10 = vsyncpa [#allocation3], 0
    %11 = vsyncpa [#allocation6], 0
    %12 = vsyncpa [#allocation4], 0
    // Predicated region
    $region2: #{tpu_custom_call.1} parent=1 // pred_check
      _
    $region3: #{tpu_custom_call.1} parent=1 // pred_check_branch
      %14 = sbr.rel (0) target = $region5
    $region4: #{tpu_custom_call.1} parent=1 // pred_region
      %s16 = ssub.s32 768, 768
      %17 = vsyncadd [#allocation3], %s16
      %s19 = sshll.u32 [#allocation2], 4
      %s20 = int_to_ptr.vmem [resolvable:$true] %s19
      %22 = dma.hbm_to_vmem [thread:$0]  %s0, 768, %s20, [#allocation3]
    $region5: #{tpu_custom_call.1} parent=1 // pred_fallthru
      _
    // Predicated region
    $region6: #{tpu_custom_call.1} parent=1 // pred_check
      _
    $region7: #{tpu_custom_call.1} parent=1 // pred_check_branch
      %24 = sbr.rel (0) target = $region9
    $region8: #{tpu_custom_call.1} parent=1 // pred_region
      %s26 = ssub.s32 6144, 6144
      %27 = vsyncadd [#allocation6], %s26
      %s28 = sshll.u32 [#allocation5], 4
      %s29 = int_to_ptr.vmem [resolvable:$true] %s28
      %34 = dma.hbm_to_vmem [thread:$0]  %s1, 6144, %s29, [#allocation6], 64, 64, 4
    $region9: #{tpu_custom_call.1} parent=1 // pred_fallthru
      _
    // Predicated region
    $region10: #{tpu_custom_call.1} parent=1 // pred_check
      _
    $region11: #{tpu_custom_call.1} parent=1 // pred_check_branch
      %36 = sbr.rel (0) target = $region13
    $region12: #{tpu_custom_call.1} parent=1 // pred_region
      _
    $region13: #{tpu_custom_call.1} parent=1 // pred_fallthru
      _
    // Predicated region
    $region14: #{tpu_custom_call.1} parent=1 // pred_check
      _
    $region15: #{tpu_custom_call.1} parent=1 // pred_check_branch
      %38 = sbr.rel (0) target = $region17
    $region16: #{tpu_custom_call.1} parent=1 // pred_region
      _
    $region17: #{tpu_custom_call.1} parent=1 // pred_fallthru
      _
    // Predicated region
    $region18: #{tpu_custom_call.1} parent=1 // pred_check
      _
    $region19: #{tpu_custom_call.1} parent=1 // pred_check_branch
      %40 = sbr.rel (0) target = $region21
    $region20: #{tpu_custom_call.1} parent=1 // pred_region
      _
    $region21: #{tpu_custom_call.1} parent=1 // pred_fallthru
      _
    // Predicated region
    $region22: #{tpu_custom_call.1} parent=1 // pred_check
      _
    $region23: #{tpu_custom_call.1} parent=1 // pred_check_branch
      %42 = sbr.rel (0) target = $region25
    $region24: #{tpu_custom_call.1} parent=1 // pred_region
      %43 = dma.done [#allocation3], 768
    $region25: #{tpu_custom_call.1} parent=1 // pred_fallthru
      _
    // Predicated region
    $region26: #{tpu_custom_call.1} parent=1 // pred_check
      _
    $region27: #{tpu_custom_call.1} parent=1 // pred_check_branch
      %45 = sbr.rel (0) target = $region29
    $region28: #{tpu_custom_call.1} parent=1 // pred_region
      %46 = dma.done [#allocation6], 6144
    $region29: #{tpu_custom_call.1} parent=1 // pred_fallthru
      _
    %v48 = vld [vmem:[#allocation2] sm:$0xff]
    %v49 = vld [vmem:[#allocation2 + $0x8] sm:$0xff]
    %v50 = vld [vmem:[#allocation2 + $0x10] sm:$0xff]
    %v51 = vld [vmem:[#allocation2 + $0x18] sm:$0xff]
    %v52 = vld [vmem:[#allocation2 + $0x20] sm:$0xff]
    %v53 = vld [vmem:[#allocation2 + $0x28] sm:$0xff]
    %v54 = vpack.c.bf16 %v48, %v48
    %v55 = vpack.c.bf16 %v49, %v49
    %v56 = vpack.c.bf16 %v50, %v50
    %v57 = vpack.c.bf16 %v51, %v51
    %v58 = vpack.c.bf16 %v52, %v52
    %v59 = vpack.c.bf16 %v53, %v53
    %v60 = vld [vmem:[#allocation5] sm:$0xf]
    %v61 = vld [vmem:[#allocation5 + $0x4] sm:$0xf]
    %v62 = vld [vmem:[#allocation5 + $0x8] sm:$0xf]
    %v63 = vld [vmem:[#allocation5 + $0xc] sm:$0xf]
    %v64 = vld [vmem:[#allocation5 + $0x10] sm:$0xf]
    %v65 = vld [vmem:[#allocation5 + $0x14] sm:$0xf]
    %v66 = vld [vmem:[#allocation5 + $0x18] sm:$0xf]
    %v67 = vld [vmem:[#allocation5 + $0x1c] sm:$0xf]
    %v68 = vld [vmem:[#allocation5 + $0x20] sm:$0xf]
    %v69 = vld [vmem:[#allocation5 + $0x24] sm:$0xf]
    %v70 = vld [vmem:[#allocation5 + $0x28] sm:$0xf]
    %v71 = vld [vmem:[#allocation5 + $0x2c] sm:$0xf]
    %v72 = vld [vmem:[#allocation5 + $0x30] sm:$0xf]
    %v73 = vld [vmem:[#allocation5 + $0x34] sm:$0xf]
    %v74 = vld [vmem:[#allocation5 + $0x38] sm:$0xf]
    %v75 = vld [vmem:[#allocation5 + $0x3c] sm:$0xf]
    %v76 = vld [vmem:[#allocation5 + $0x40] sm:$0xf]
    %v77 = vld [vmem:[#allocation5 + $0x44] sm:$0xf]
    %v78 = vld [vmem:[#allocation5 + $0x48] sm:$0xf]
    %v79 = vld [vmem:[#allocation5 + $0x4c] sm:$0xf]
    %v80 = vld [vmem:[#allocation5 + $0x50] sm:$0xf]
    %v81 = vld [vmem:[#allocation5 + $0x54] sm:$0xf]
    %v82 = vld [vmem:[#allocation5 + $0x58] sm:$0xf]
    %v83 = vld [vmem:[#allocation5 + $0x5c] sm:$0xf]
    %v84 = vld [vmem:[#allocation5 + $0x60] sm:$0xf]
    %v85 = vld [vmem:[#allocation5 + $0x64] sm:$0xf]
    %v86 = vld [vmem:[#allocation5 + $0x68] sm:$0xf]
    %v87 = vld [vmem:[#allocation5 + $0x6c] sm:$0xf]
    %v88 = vld [vmem:[#allocation5 + $0x70] sm:$0xf]
    %v89 = vld [vmem:[#allocation5 + $0x74] sm:$0xf]
    %v90 = vld [vmem:[#allocation5 + $0x78] sm:$0xf]
    %v91 = vld [vmem:[#allocation5 + $0x7c] sm:$0xf]
    %v92 = vld [vmem:[#allocation5 + $0x80] sm:$0xf]
    %v93 = vld [vmem:[#allocation5 + $0x84] sm:$0xf]
    %v94 = vld [vmem:[#allocation5 + $0x88] sm:$0xf]
    %v95 = vld [vmem:[#allocation5 + $0x8c] sm:$0xf]
    %v96 = vld [vmem:[#allocation5 + $0x90] sm:$0xf]
    %v97 = vld [vmem:[#allocation5 + $0x94] sm:$0xf]
    %v98 = vld [vmem:[#allocation5 + $0x98] sm:$0xf]
    %v99 = vld [vmem:[#allocation5 + $0x9c] sm:$0xf]
    %v100 = vld [vmem:[#allocation5 + $0xa0] sm:$0xf]
    %v101 = vld [vmem:[#allocation5 + $0xa4] sm:$0xf]
    %v102 = vld [vmem:[#allocation5 + $0xa8] sm:$0xf]
    %v103 = vld [vmem:[#allocation5 + $0xac] sm:$0xf]
    %v104 = vld [vmem:[#allocation5 + $0xb0] sm:$0xf]
    %v105 = vld [vmem:[#allocation5 + $0xb4] sm:$0xf]
    %v106 = vld [vmem:[#allocation5 + $0xb8] sm:$0xf]
    %v107 = vld [vmem:[#allocation5 + $0xbc] sm:$0xf]
    %v108 = vld [vmem:[#allocation5 + $0xc0] sm:$0xf]
    %v109 = vld [vmem:[#allocation5 + $0xc4] sm:$0xf]
    %v110 = vld [vmem:[#allocation5 + $0xc8] sm:$0xf]
    %v111 = vld [vmem:[#allocation5 + $0xcc] sm:$0xf]
    %v112 = vld [vmem:[#allocation5 + $0xd0] sm:$0xf]
    %v113 = vld [vmem:[#allocation5 + $0xd4] sm:$0xf]
    %v114 = vld [vmem:[#allocation5 + $0xd8] sm:$0xf]
    %v115 = vld [vmem:[#allocation5 + $0xdc] sm:$0xf]
    %v116 = vld [vmem:[#allocation5 + $0xe0] sm:$0xf]
    %v117 = vld [vmem:[#allocation5 + $0xe4] sm:$0xf]
    %v118 = vld [vmem:[#allocation5 + $0xe8] sm:$0xf]
    %v119 = vld [vmem:[#allocation5 + $0xec] sm:$0xf]
    %v120 = vld [vmem:[#allocation5 + $0xf0] sm:$0xf]
    %v121 = vld [vmem:[#allocation5 + $0xf4] sm:$0xf]
    %v122 = vld [vmem:[#allocation5 + $0xf8] sm:$0xf]
    %v123 = vld [vmem:[#allocation5 + $0xfc] sm:$0xf]
    %v124 = vld [vmem:[#allocation5 + $0x100] sm:$0xf]
    %v125 = vld [vmem:[#allocation5 + $0x104] sm:$0xf]
    %v126 = vld [vmem:[#allocation5 + $0x108] sm:$0xf]
    %v127 = vld [vmem:[#allocation5 + $0x10c] sm:$0xf]
    %v128 = vld [vmem:[#allocation5 + $0x110] sm:$0xf]
    %v129 = vld [vmem:[#allocation5 + $0x114] sm:$0xf]
    %v130 = vld [vmem:[#allocation5 + $0x118] sm:$0xf]
    %v131 = vld [vmem:[#allocation5 + $0x11c] sm:$0xf]
    %v132 = vld [vmem:[#allocation5 + $0x120] sm:$0xf]
    %v133 = vld [vmem:[#allocation5 + $0x124] sm:$0xf]
    %v134 = vld [vmem:[#allocation5 + $0x128] sm:$0xf]
    %v135 = vld [vmem:[#allocation5 + $0x12c] sm:$0xf]
    %v136 = vld [vmem:[#allocation5 + $0x130] sm:$0xf]
    %v137 = vld [vmem:[#allocation5 + $0x134] sm:$0xf]
    %v138 = vld [vmem:[#allocation5 + $0x138] sm:$0xf]
    %v139 = vld [vmem:[#allocation5 + $0x13c] sm:$0xf]
    %v140 = vld [vmem:[#allocation5 + $0x140] sm:$0xf]
    %v141 = vld [vmem:[#allocation5 + $0x144] sm:$0xf]
    %v142 = vld [vmem:[#allocation5 + $0x148] sm:$0xf]
    %v143 = vld [vmem:[#allocation5 + $0x14c] sm:$0xf]
    %v144 = vld [vmem:[#allocation5 + $0x150] sm:$0xf]
    %v145 = vld [vmem:[#allocation5 + $0x154] sm:$0xf]
    %v146 = vld [vmem:[#allocation5 + $0x158] sm:$0xf]
    %v147 = vld [vmem:[#allocation5 + $0x15c] sm:$0xf]
    %v148 = vld [vmem:[#allocation5 + $0x160] sm:$0xf]
    %v149 = vld [vmem:[#allocation5 + $0x164] sm:$0xf]
    %v150 = vld [vmem:[#allocation5 + $0x168] sm:$0xf]
    %v151 = vld [vmem:[#allocation5 + $0x16c] sm:$0xf]
    %v152 = vld [vmem:[#allocation5 + $0x170] sm:$0xf]
    %v153 = vld [vmem:[#allocation5 + $0x174] sm:$0xf]
    %v154 = vld [vmem:[#allocation5 + $0x178] sm:$0xf]
    %v155 = vld [vmem:[#allocation5 + $0x17c] sm:$0xf]
    %v156 = vld [vmem:[%s2] sm:$0x1]
    %v158 = vlaneseq
    %v159 = vshrl.u32 %v158, 7
    %v160 = vsub.s32 0, %v159
    %v161 = vrot.slane %v156, %v160
    %v259 = vunpack.c.l.b16 %v60
    %v260 = vunpack.c.l.b16 %v61
    %v261 = vunpack.c.l.b16 %v62
    %v262 = vunpack.c.l.b16 %v63
    %v263 = vunpack.c.l.b16 %v64
    %v264 = vunpack.c.l.b16 %v65
    %v265 = vunpack.c.l.b16 %v66
    %v266 = vunpack.c.l.b16 %v67
    %v267 = vunpack.c.l.b16 %v68
    %v268 = vunpack.c.l.b16 %v69
    %v269 = vunpack.c.l.b16 %v70
    %v270 = vunpack.c.l.b16 %v71
    %v271 = vunpack.c.l.b16 %v72
    %v272 = vunpack.c.l.b16 %v73
    %v273 = vunpack.c.l.b16 %v74
    %v274 = vunpack.c.l.b16 %v75
    %v275 = vunpack.c.l.b16 %v76
    %v276 = vunpack.c.l.b16 %v77
    %v277 = vunpack.c.l.b16 %v78
    %v278 = vunpack.c.l.b16 %v79
    %v279 = vunpack.c.l.b16 %v80
    %v280 = vunpack.c.l.b16 %v81
    %v281 = vunpack.c.l.b16 %v82
    %v282 = vunpack.c.l.b16 %v83
    %v283 = vunpack.c.l.b16 %v84
    %v284 = vunpack.c.l.b16 %v85
    %v285 = vunpack.c.l.b16 %v86
    %v286 = vunpack.c.l.b16 %v87
    %v287 = vunpack.c.l.b16 %v88
    %v288 = vunpack.c.l.b16 %v89
    %v289 = vunpack.c.l.b16 %v90
    %v290 = vunpack.c.l.b16 %v91
    %v291 = vunpack.c.l.b16 %v92
    %v292 = vunpack.c.l.b16 %v93
    %v293 = vunpack.c.l.b16 %v94
    %v294 = vunpack.c.l.b16 %v95
    %v295 = vunpack.c.l.b16 %v96
    %v296 = vunpack.c.l.b16 %v97
    %v297 = vunpack.c.l.b16 %v98
    %v298 = vunpack.c.l.b16 %v99
    %v299 = vunpack.c.l.b16 %v100
    %v300 = vunpack.c.l.b16 %v101
    %v301 = vunpack.c.l.b16 %v102
    %v302 = vunpack.c.l.b16 %v103
    %v303 = vunpack.c.l.b16 %v104
    %v304 = vunpack.c.l.b16 %v105
    %v305 = vunpack.c.l.b16 %v106
    %v306 = vunpack.c.l.b16 %v107
    %v307 = vunpack.c.l.b16 %v108
    %v308 = vunpack.c.l.b16 %v109
    %v309 = vunpack.c.l.b16 %v110
    %v310 = vunpack.c.l.b16 %v111
    %v311 = vunpack.c.l.b16 %v112
    %v312 = vunpack.c.l.b16 %v113
    %v313 = vunpack.c.l.b16 %v114
    %v314 = vunpack.c.l.b16 %v115
    %v315 = vunpack.c.l.b16 %v116
    %v316 = vunpack.c.l.b16 %v117
    %v317 = vunpack.c.l.b16 %v118
    %v318 = vunpack.c.l.b16 %v119
    %v319 = vunpack.c.l.b16 %v120
    %v320 = vunpack.c.l.b16 %v121
    %v321 = vunpack.c.l.b16 %v122
    %v322 = vunpack.c.l.b16 %v123
    %v323 = vunpack.c.l.b16 %v124
    %v324 = vunpack.c.l.b16 %v125
    %v325 = vunpack.c.l.b16 %v126
    %v326 = vunpack.c.l.b16 %v127
    %v327 = vunpack.c.l.b16 %v128
    %v328 = vunpack.c.l.b16 %v129
    %v329 = vunpack.c.l.b16 %v130
    %v330 = vunpack.c.l.b16 %v131
    %v331 = vunpack.c.l.b16 %v132
    %v332 = vunpack.c.l.b16 %v133
    %v333 = vunpack.c.l.b16 %v134
    %v334 = vunpack.c.l.b16 %v135
    %v335 = vunpack.c.l.b16 %v136
    %v336 = vunpack.c.l.b16 %v137
    %v337 = vunpack.c.l.b16 %v138
    %v338 = vunpack.c.l.b16 %v139
    %v339 = vunpack.c.l.b16 %v140
    %v340 = vunpack.c.l.b16 %v141
    %v341 = vunpack.c.l.b16 %v142
    %v342 = vunpack.c.l.b16 %v143
    %v343 = vunpack.c.l.b16 %v144
    %v344 = vunpack.c.l.b16 %v145
    %v345 = vunpack.c.l.b16 %v146
    %v346 = vunpack.c.l.b16 %v147
    %v347 = vunpack.c.l.b16 %v148
    %v348 = vunpack.c.l.b16 %v149
    %v349 = vunpack.c.l.b16 %v150
    %v350 = vunpack.c.l.b16 %v151
    %v351 = vunpack.c.l.b16 %v152
    %v352 = vunpack.c.l.b16 %v153
    %v353 = vunpack.c.l.b16 %v154
    %v354 = vunpack.c.l.b16 %v155
    %v355 = vpack.c.b16 %v260, %v259
    %v356 = vpack.c.b16 %v262, %v261
    %v357 = vpack.c.b16 %v264, %v263
    %v358 = vpack.c.b16 %v266, %v265
    %v359 = vpack.c.b16 %v268, %v267
    %v360 = vpack.c.b16 %v270, %v269
    %v361 = vpack.c.b16 %v272, %v271
    %v362 = vpack.c.b16 %v274, %v273
    %v363 = vpack.c.b16 %v276, %v275
    %v364 = vpack.c.b16 %v278, %v277
    %v365 = vpack.c.b16 %v280, %v279
    %v366 = vpack.c.b16 %v282, %v281
    %v367 = vpack.c.b16 %v284, %v283
    %v368 = vpack.c.b16 %v286, %v285
    %v369 = vpack.c.b16 %v288, %v287
    %v370 = vpack.c.b16 %v290, %v289
    %v371 = vpack.c.b16 %v292, %v291
    %v372 = vpack.c.b16 %v294, %v293
    %v373 = vpack.c.b16 %v296, %v295
    %v374 = vpack.c.b16 %v298, %v297
    %v375 = vpack.c.b16 %v300, %v299
    %v376 = vpack.c.b16 %v302, %v301
    %v377 = vpack.c.b16 %v304, %v303
    %v378 = vpack.c.b16 %v306, %v305
    %v379 = vpack.c.b16 %v308, %v307
    %v380 = vpack.c.b16 %v310, %v309
    %v381 = vpack.c.b16 %v312, %v311
    %v382 = vpack.c.b16 %v314, %v313
    %v383 = vpack.c.b16 %v316, %v315
    %v384 = vpack.c.b16 %v318, %v317
    %v385 = vpack.c.b16 %v320, %v319
    %v386 = vpack.c.b16 %v322, %v321
    %v387 = vpack.c.b16 %v324, %v323
    %v388 = vpack.c.b16 %v326, %v325
    %v389 = vpack.c.b16 %v328, %v327
    %v390 = vpack.c.b16 %v330, %v329
    %v391 = vpack.c.b16 %v332, %v331
    %v392 = vpack.c.b16 %v334, %v333
    %v393 = vpack.c.b16 %v336, %v335
    %v394 = vpack.c.b16 %v338, %v337
    %v395 = vpack.c.b16 %v340, %v339
    %v396 = vpack.c.b16 %v342, %v341
    %v397 = vpack.c.b16 %v344, %v343
    %v398 = vpack.c.b16 %v346, %v345
    %v399 = vpack.c.b16 %v348, %v347
    %v400 = vpack.c.b16 %v350, %v349
    %v401 = vpack.c.b16 %v352, %v351
    %v402 = vpack.c.b16 %v354, %v353
    %451 = vmatprep.subr.bf16.mxu0 0
    %452 = vmatpush1.bf16.msra.mxu0 %v362
    %453 = vmatprep.subr.bf16.mxu0 0
    %454 = vmatpush1.bf16.msra.mxu0 %v361
    %455 = vmatprep.subr.bf16.mxu0 0
    %456 = vmatpush1.bf16.msra.mxu0 %v360
    %457 = vmatprep.subr.bf16.mxu0 0
    %458 = vmatpush1.bf16.msra.mxu0 %v359
    %459 = vmatprep.subr.bf16.mxu0 0
    %460 = vmatpush1.bf16.msra.mxu0 %v358
    %461 = vmatprep.subr.bf16.mxu0 0
    %462 = vmatpush1.bf16.msra.mxu0 %v357
    %463 = vmatprep.subr.bf16.mxu0 0
    %464 = vmatpush1.bf16.msra.mxu0 %v356
    %465 = vmatprep.subr.bf16.mxu0 0
    %466 = vmatpush1.bf16.msra.mxu0 %v355
    %467 = vmatprep.subr.bf16.mxu0 0
    %468 = vmatpush2.bf16.msra.mxu0 %v370
    %469 = vmatprep.subr.bf16.mxu0 0
    %470 = vmatpush2.bf16.msra.mxu0 %v369
    %471 = vmatprep.subr.bf16.mxu0 0
    %472 = vmatpush2.bf16.msra.mxu0 %v368
    %473 = vmatprep.subr.bf16.mxu0 0
    %474 = vmatpush2.bf16.msra.mxu0 %v367
    %475 = vmatprep.subr.bf16.mxu0 0
    %476 = vmatpush2.bf16.msra.mxu0 %v366
    %477 = vmatprep.subr.bf16.mxu0 0
    %478 = vmatpush2.bf16.msra.mxu0 %v365
    %479 = vmatprep.subr.bf16.mxu0 0
    %480 = vmatpush2.bf16.msra.mxu0 %v364
    %481 = vmatprep.subr.bf16.mxu0 0
    %482 = vmatpush2.bf16.msra.mxu0 %v363
    %483 = vmatprep.mubr.bf16.mxu0 %v55
    %484 = vmatmul.mubr.bf16.gmra.mxu0 %v54
    %v485 = vpop.f32.mrf.mxu0
    %v486 = vadd.f32 %v161, %v485
    %v487 = vpop.f32.mrf.mxu0
    %v488 = vpop.f32.mrf.mxu0
    %v489 = vpop.f32.mrf.mxu0
    %490 = vdwg.mxu0
    %491 = vmatprep.subr.bf16.mxu0 0
    %492 = vmatpush1.bf16.msra.mxu0 %v378
    %493 = vmatprep.subr.bf16.mxu0 0
    %494 = vmatpush1.bf16.msra.mxu0 %v377
    %495 = vmatprep.subr.bf16.mxu0 0
    %496 = vmatpush1.bf16.msra.mxu0 %v376
    %497 = vmatprep.subr.bf16.mxu0 0
    %498 = vmatpush1.bf16.msra.mxu0 %v375
    %499 = vmatprep.subr.bf16.mxu0 0
    %500 = vmatpush1.bf16.msra.mxu0 %v374
    %501 = vmatprep.subr.bf16.mxu0 0
    %502 = vmatpush1.bf16.msra.mxu0 %v373
    %503 = vmatprep.subr.bf16.mxu0 0
    %504 = vmatpush1.bf16.msra.mxu0 %v372
    %505 = vmatprep.subr.bf16.mxu0 0
    %506 = vmatpush1.bf16.msra.mxu0 %v371
    %507 = vmatprep.subr.bf16.mxu0 0
    %508 = vmatpush2.bf16.msra.mxu0 %v386
    %509 = vmatprep.subr.bf16.mxu0 0
    %510 = vmatpush2.bf16.msra.mxu0 %v385
    %511 = vmatprep.subr.bf16.mxu0 0
    %512 = vmatpush2.bf16.msra.mxu0 %v384
    %513 = vmatprep.subr.bf16.mxu0 0
    %514 = vmatpush2.bf16.msra.mxu0 %v383
    %515 = vmatprep.subr.bf16.mxu0 0
    %516 = vmatpush2.bf16.msra.mxu0 %v382
    %517 = vmatprep.subr.bf16.mxu0 0
    %518 = vmatpush2.bf16.msra.mxu0 %v381
    %519 = vmatprep.subr.bf16.mxu0 0
    %520 = vmatpush2.bf16.msra.mxu0 %v380
    %521 = vmatprep.subr.bf16.mxu0 0
    %522 = vmatpush2.bf16.msra.mxu0 %v379
    %523 = vmatprep.mubr.bf16.mxu0 %v57
    %524 = vmatmul.mubr.bf16.gmra.mxu0 %v56
    %v525 = vpop.f32.mrf.mxu0
    %v526 = vadd.f32 %v486, %v525
    %v527 = vpop.f32.mrf.mxu0
    %v528 = vpop.f32.mrf.mxu0
    %v529 = vpop.f32.mrf.mxu0
    %530 = vdwg.mxu0
    %531 = vmatprep.subr.bf16.mxu0 0
    %532 = vmatpush1.bf16.msra.mxu0 %v394
    %533 = vmatprep.subr.bf16.mxu0 0
    %534 = vmatpush1.bf16.msra.mxu0 %v393
    %535 = vmatprep.subr.bf16.mxu0 0
    %536 = vmatpush1.bf16.msra.mxu0 %v392
    %537 = vmatprep.subr.bf16.mxu0 0
    %538 = vmatpush1.bf16.msra.mxu0 %v391
    %539 = vmatprep.subr.bf16.mxu0 0
    %540 = vmatpush1.bf16.msra.mxu0 %v390
    %541 = vmatprep.subr.bf16.mxu0 0
    %542 = vmatpush1.bf16.msra.mxu0 %v389
    %543 = vmatprep.subr.bf16.mxu0 0
    %544 = vmatpush1.bf16.msra.mxu0 %v388
    %545 = vmatprep.subr.bf16.mxu0 0
    %546 = vmatpush1.bf16.msra.mxu0 %v387
    %547 = vmatprep.subr.bf16.mxu0 0
    %548 = vmatpush2.bf16.msra.mxu0 %v402
    %549 = vmatprep.subr.bf16.mxu0 0
    %550 = vmatpush2.bf16.msra.mxu0 %v401
    %551 = vmatprep.subr.bf16.mxu0 0
    %552 = vmatpush2.bf16.msra.mxu0 %v400
    %553 = vmatprep.subr.bf16.mxu0 0
    %554 = vmatpush2.bf16.msra.mxu0 %v399
    %555 = vmatprep.subr.bf16.mxu0 0
    %556 = vmatpush2.bf16.msra.mxu0 %v398
    %557 = vmatprep.subr.bf16.mxu0 0
    %558 = vmatpush2.bf16.msra.mxu0 %v397
    %559 = vmatprep.subr.bf16.mxu0 0
    %560 = vmatpush2.bf16.msra.mxu0 %v396
    %561 = vmatprep.subr.bf16.mxu0 0
    %562 = vmatpush2.bf16.msra.mxu0 %v395
    %563 = vmatprep.mubr.bf16.mxu0 %v59
    %564 = vmatmul.mubr.bf16.gmra.mxu0 %v58
    %v565 = vpop.f32.mrf.mxu0
    %v566 = vadd.f32 %v526, %v565
    %v567 = vpop.f32.mrf.mxu0
    %v568 = vpop.f32.mrf.mxu0
    %v569 = vpop.f32.mrf.mxu0
    %570 = vdwg.mxu0
    %v571 = vmax.f32 %v566, 0.0
    %v572 = vld [vmem:[%s3] sm:$0xf]
    %v573 = vpack.c.bf16 %v571, %v571
    %v574 = vld [vmem:[%s4] sm:$0xff]
    %576 = vset.pattern.permute.xlu0 0
    %577 = vperm.xlu0 %576, %v574
    %v578 = vpop.permute.xlu0 %577
    %580 = vmatprep.subr.bf16.mxu0 0
    %581 = vmatpush1.bf16.xpose.msra.mxu0 0
    %582 = vmatprep.subr.bf16.mxu0 0
    %583 = vmatpush1.bf16.xpose.msra.mxu0 0
    %584 = vmatprep.subr.bf16.mxu0 0
    %585 = vmatpush1.bf16.xpose.msra.mxu0 0
    %586 = vmatprep.subr.bf16.mxu0 0
    %587 = vmatpush1.bf16.xpose.msra.mxu0 0
    %588 = vmatprep.subr.bf16.mxu0 0
    %589 = vmatpush1.bf16.xpose.msra.mxu0 0
    %590 = vmatprep.subr.bf16.mxu0 0
    %591 = vmatpush1.bf16.xpose.msra.mxu0 0
    %592 = vmatprep.subr.bf16.mxu0 0
    %593 = vmatpush1.bf16.xpose.msra.mxu0 0
    %594 = vmatprep.subr.bf16.mxu0 0
    %595 = vmatpush1.bf16.xpose.msra.mxu0 %v573
    %596 = vmatprep.subr.bf16.mxu0 0
    %597 = vmatpush2.bf16.xpose.msra.mxu0 0
    %598 = vmatprep.subr.bf16.mxu0 0
    %599 = vmatpush2.bf16.xpose.msra.mxu0 0
    %600 = vmatprep.subr.bf16.mxu0 0
    %601 = vmatpush2.bf16.xpose.msra.mxu0 0
    %602 = vmatprep.subr.bf16.mxu0 0
    %603 = vmatpush2.bf16.xpose.msra.mxu0 0
    %604 = vmatprep.subr.bf16.mxu0 0
    %605 = vmatpush2.bf16.xpose.msra.mxu0 0
    %606 = vmatprep.subr.bf16.mxu0 0
    %607 = vmatpush2.bf16.xpose.msra.mxu0 0
    %608 = vmatprep.subr.bf16.mxu0 0
    %609 = vmatpush2.bf16.xpose.msra.mxu0 0
    %610 = vmatprep.subr.bf16.mxu0 0
    %611 = vmatpush2.bf16.xpose.msra.mxu0 0
    %612 = vmatprep.mubr.bf16.mxu0 0
    %613 = vmatmul.mubr.bf16.gmra.mxu0 %v572
    %v614 = vpop.f32.mrf.mxu0
    %v615 = vadd.f32 %v578, %v614
    %v616 = vpop.f32.mrf.mxu0
    %v617 = vpop.f32.mrf.mxu0
    %v618 = vpop.f32.mrf.mxu0
    %619 = vdwg.mxu0
    %vm620 = vcmask 64512
    %621 = vst.msk [vmem:[#allocation7] sm:$0xff] %vm620, %v615
    // Predicated region
    $region30: #{tpu_custom_call.1} parent=1 // pred_check
      _
    $region31: #{tpu_custom_call.1} parent=1 // pred_check_branch
      %623 = sbr.rel (0) target = $region33
    $region32: #{tpu_custom_call.1} parent=1 // pred_region
      %s625 = ssub.s32 128, 128
      %626 = vsyncadd [#allocation4], %s625
      %s628 = sshll.u32 [#allocation7], 4
      %s629 = int_to_ptr.vmem [resolvable:$true] %s628
      %631 = dma.vmem_to_hbm [thread:$0]  %s629, 128, %s5, [#allocation4]
    $region33: #{tpu_custom_call.1} parent=1 // pred_fallthru
      _
    // Predicated region
    $region34: #{tpu_custom_call.1} parent=1 // pred_check
      _
    $region35: #{tpu_custom_call.1} parent=1 // pred_check_branch
      %633 = sbr.rel (0) target = $region37
    $region36: #{tpu_custom_call.1} parent=1 // pred_region
      %634 = dma.done [#allocation4], 128
    $region37: #{tpu_custom_call.1} parent=1 // pred_fallthru
      _
    %635 = vsyncpa [#allocation3], 1
    %636 = vsyncpa [#allocation6], 1
    %637 = vsyncpa [#allocation4], 1

</llo_original>
